<compile_context>
chip_gen: v7x
topology: tpu7x:2x2x1
jax: 0.10.0
libtpu: 0.0.40
codegen_flags: <defaults>
</compile_context>

<pallas_src>
import jax
import jax.numpy as jnp
from jax.experimental import pallas as pl
from jax.experimental.pallas import tpu as pltpu


def _se_like_kernel(x_ref, w_ref, scale_ref, shift_ref, o_ref):
    """One grid step == (batch b, spatial tile t).

    x_ref     : (1, C_in, T)    VMEM  NCHW activations, HW flattened & tiled
    w_ref     : (C_feat, C_in)  VMEM  1x1 conv weight
    scale_ref : (1, C_feat, 1)  VMEM  sigmoid gate y[b]            (float32)
    shift_ref : (1, C_feat, 1)  VMEM  conv bias folded: b_conv*y[b] (float32)
    o_ref     : (1, C_feat, T)  VMEM  output tile (already NCHW layout)
    """
    # 1x1 conv == (C_feat, C_in) @ (C_in, T) matmul; f32 accumulation on MXU.
    feat = jnp.dot(w_ref[...], x_ref[0], preferred_element_type=jnp.float32)
    # Epilogue in float32 (no bf16 VPU on v5e); cast only at the store.
    o_ref[0] = (feat * scale_ref[0] + shift_ref[0]).astype(o_ref.dtype)


def _spatial_tiling(hw, c_in, c_feat, x_itemsize, out_itemsize):
    """Pick a lane-aligned spatial tile T and padded HW.

    VMEM cost per step (double-buffered input + output tile) is kept well
    under ~8 MiB so 2-deep pipelining survives v7x's 64 MiB VMEM.
    """
    bytes_per_col = 2 * (c_in * x_itemsize + c_feat * out_itemsize)
    budget = 8 * 1024 * 1024
    t_max = max(128, (budget // bytes_per_col) // 128 * 128)
    if hw <= t_max:
        return hw, hw                       # single tile == full dim
    n_tiles = -(-hw // t_max)               # cdiv
    t = -(-hw // n_tiles)
    t = ((t + 127) // 128) * 128            # lane-aligned
    return t, n_tiles * t


@jax.jit
def se_like_forward(x_nchw, cam_params, params):
    """x_nchw: (B, C_in, H, W); cam_params: (B, K). Returns (B, C_feat, H, W)."""
    B, C_in, H, W = x_nchw.shape
    C_feat = params["w_conv"].shape[0]
    HW = H * W
    x_dtype = x_nchw.dtype
    out_dtype = x_dtype

    # ---- SE branch (eval-mode BatchNorm1d -> Linear -> Sigmoid) in plain JAX.
    # It is a (B, C_feat) tensor: negligible work, and moving it out of the
    # kernel removes 5 tiny lane-padded per-step DMAs and avoids recompute
    # once HW is tiled.
    eps = 1e-5
    cam32 = cam_params.astype(jnp.float32)
    bn_scale = params["bn_gamma"] / jnp.sqrt(params["bn_running_var"] + eps)
    cam_bn = (cam32 - params["bn_running_mean"]) * bn_scale + params["bn_beta"]
    y = jax.nn.sigmoid(cam_bn @ params["w_fc"].T.astype(jnp.float32)
                       + params["b_fc"])                       # (B, C_feat) f32
    # Fold the conv bias through the gate: out = (W x) * y + b_conv * y.
    scale = y.reshape(B, C_feat, 1).astype(jnp.float32)
    shift = (y * params["b_conv"]).reshape(B, C_feat, 1).astype(jnp.float32)

    # ---- NCHW-native kernel operands (free reshape, no transposes).
    x_tok = x_nchw.reshape(B, C_in, HW)
    w_conv = params["w_conv"].reshape(C_feat, C_in).astype(x_dtype)

    x_bytes = jnp.dtype(x_dtype).itemsize
    o_bytes = jnp.dtype(out_dtype).itemsize
    T, HW_pad = _spatial_tiling(HW, C_in, C_feat, x_bytes, o_bytes)
    if HW_pad != HW:
        x_tok = jnp.pad(x_tok, ((0, 0), (0, 0), (0, HW_pad - HW)))

    grid = (B, HW_pad // T)
    cost = pl.CostEstimate(
        flops=2 * B * HW_pad * C_in * C_feat,
        transcendentals=0,
        bytes_accessed=(B * C_in * HW_pad * x_bytes
                        + B * C_feat * HW_pad * o_bytes
                        + C_feat * C_in * x_bytes
                        + 2 * B * C_feat * 4),
    )

    out_tok = pl.pallas_call(
        _se_like_kernel,
        out_shape=jax.ShapeDtypeStruct((B, C_feat, HW_pad), out_dtype),
        grid=grid,
        in_specs=[
            pl.BlockSpec((1, C_in, T), lambda b, t: (b, 0, t)),
            pl.BlockSpec((C_feat, C_in), lambda b, t: (0, 0)),
            pl.BlockSpec((1, C_feat, 1), lambda b, t: (b, 0, 0)),
            pl.BlockSpec((1, C_feat, 1), lambda b, t: (b, 0, 0)),
        ],
        out_specs=pl.BlockSpec((1, C_feat, T), lambda b, t: (b, 0, t)),
        compiler_params=pltpu.CompilerParams(
            dimension_semantics=("parallel", "parallel"),
            vmem_limit_bytes=32 * 1024 * 1024),
        cost_estimate=cost,
    )(x_tok, w_conv, scale, shift)

    if HW_pad != HW:
        out_tok = out_tok[:, :, :HW]
    return out_tok.reshape(B, C_feat, H, W)   # already NCHW; free reshape


def _reference_forward(x_nchw, cam_params, params):
    """Pure-JAX reference matching the PyTorch module (eval-mode BN), f32."""
    C_feat = params["w_conv"].shape[0]
    C_in = params["w_conv"].shape[1]
    eps = 1e-5
    w = params["w_conv"].reshape(C_feat, C_in)
    feat = (jnp.einsum("bchw,fc->bfhw", x_nchw, w)
            + params["b_conv"][None, :, None, None])
    cam_bn = (cam_params - params["bn_running_mean"]) / jnp.sqrt(
        params["bn_running_var"] + eps) * params["bn_gamma"] + params["bn_beta"]
    y = jax.nn.sigmoid(cam_bn @ params["w_fc"].T + params["b_fc"])   # (B, C_feat)
    return feat * y[:, :, None, None]


def init_params(key, in_channel, feat_channel, intrinsic_channel):
    ks = jax.random.split(key, 6)
    return {
        # Conv2d(in_channel, feat_channel, kernel_size=1)
        "w_conv": jax.random.normal(ks[0], (feat_channel, in_channel, 1, 1),
                                    jnp.float32) * 0.05,
        "b_conv": jax.random.normal(ks[1], (feat_channel,), jnp.float32) * 0.05,
        # BatchNorm1d(intrinsic_channel), eval-mode running stats
        "bn_gamma": 1.0 + 0.1 * jax.random.normal(
            ks[2], (intrinsic_channel,), jnp.float32),
        "bn_beta": 0.1 * jax.random.normal(
            ks[3], (intrinsic_channel,), jnp.float32),
        "bn_running_mean": jnp.zeros((intrinsic_channel,), jnp.float32),
        "bn_running_var": jnp.ones((intrinsic_channel,), jnp.float32),
        # Linear(intrinsic_channel, feat_channel)
        "w_fc": jax.random.normal(ks[4], (feat_channel, intrinsic_channel),
                                  jnp.float32) * 0.05,
        "b_fc": jax.random.normal(ks[5], (feat_channel,), jnp.float32) * 0.05,
    }


if __name__ == "__main__":
    B, C_in, H, W = 2, 64, 16, 16
    C_feat, K = 32, 33

    key = jax.random.PRNGKey(0)
    k_x, k_cam, k_p = jax.random.split(key, 3)
    x = jax.random.normal(k_x, (B, C_in, H, W), jnp.float32)
    cam_params = jax.random.normal(k_cam, (B, K), jnp.float32)
    params = init_params(k_p, C_in, C_feat, K)

    ref = _reference_forward(x, cam_params, params)

    # float32 activation path
    out = jax.block_until_ready(se_like_forward(x, cam_params, params))
    assert out.shape == (B, C_feat, H, W)
    assert jnp.allclose(out, ref, atol=1e-3, rtol=1e-3), "f32 mismatch vs reference"

    # bf16 activation path (halves kernel HBM read; f32 accumulation/epilogue)
    out_bf16 = jax.block_until_ready(
        se_like_forward(x.astype(jnp.bfloat16), cam_params, params))
    assert out_bf16.dtype == jnp.bfloat16
    assert jnp.allclose(out_bf16.astype(jnp.float32), ref,
                        atol=5e-2, rtol=5e-2), "bf16 mismatch vs reference"

    print("KERNEL_OK")
</pallas_src>

<mosaic_0001>
module attributes {stable_mosaic.version = 11 : i64} {
  func.func @_se_like_kernel(%arg0: i32, %arg1: i32, %arg2: memref<1x64x256xf32, #tpu.memory_space<vmem>>, %arg3: memref<32x64xf32, #tpu.memory_space<vmem>>, %arg4: memref<1x32x1xf32, #tpu.memory_space<vmem>>, %arg5: memref<1x32x1xf32, #tpu.memory_space<vmem>>, %arg6: memref<1x32x256xf32, #tpu.memory_space<vmem>>) attributes {dimension_semantics = [#tpu.dimension_semantics<parallel>, #tpu.dimension_semantics<parallel>], iteration_bounds = array<i64: 2, 1>, scalar_prefetch = 0 : i64, scratch_operands = 0 : i64, tpu.core_type = #tpu.core_type<tc>, window_params = [{transform_indices = @transform_0, window_bounds = array<i64: 1, 64, 256>}, {pipeline_mode = #tpu.pipeline_mode<synchronous>, transform_indices = @transform_1, window_bounds = array<i64: 32, 64>}, {transform_indices = @transform_2, window_bounds = array<i64: 1, 32, 1>}, {transform_indices = @transform_3, window_bounds = array<i64: 1, 32, 1>}, {transform_indices = @transform_4, window_bounds = array<i64: 1, 32, 256>}]} {
    %c0 = arith.constant 0 : index
    %c0_0 = arith.constant 0 : index
    %0 = vector.load %arg3[%c0, %c0_0] : memref<32x64xf32, #tpu.memory_space<vmem>>, vector<32x64xf32>
    %c0_1 = arith.constant 0 : index
    %c0_2 = arith.constant 0 : index
    %c0_3 = arith.constant 0 : index
    %1 = vector.load %arg2[%c0_1, %c0_2, %c0_3] : memref<1x64x256xf32, #tpu.memory_space<vmem>>, vector<1x64x256xf32>
    %2 = vector.shape_cast %1 : vector<1x64x256xf32> to vector<64x256xf32>
    %cst = arith.constant dense<0.000000e+00> : vector<32x256xf32>
    %3 = tpu.matmul %0, %2, %cst {dimension_numbers = #tpu.dot_dimension_numbers<[1], [0], [0], [1], [0, 0, 1, 1], [], []>} : vector<32x64xf32>, vector<64x256xf32>, vector<32x256xf32> -> vector<32x256xf32>
    %c0_4 = arith.constant 0 : index
    %c0_5 = arith.constant 0 : index
    %c0_6 = arith.constant 0 : index
    %4 = vector.load %arg4[%c0_4, %c0_5, %c0_6] : memref<1x32x1xf32, #tpu.memory_space<vmem>>, vector<1x32x1xf32>
    %5 = vector.shape_cast %4 : vector<1x32x1xf32> to vector<32x1xf32>
    %6 = vector.broadcast %5 : vector<32x1xf32> to vector<32x256xf32>
    %7 = arith.mulf %3, %6 : vector<32x256xf32>
    %c0_7 = arith.constant 0 : index
    %c0_8 = arith.constant 0 : index
    %c0_9 = arith.constant 0 : index
    %8 = vector.load %arg5[%c0_7, %c0_8, %c0_9] : memref<1x32x1xf32, #tpu.memory_space<vmem>>, vector<1x32x1xf32>
    %9 = vector.shape_cast %8 : vector<1x32x1xf32> to vector<32x1xf32>
    %10 = vector.broadcast %9 : vector<32x1xf32> to vector<32x256xf32>
    %11 = arith.addf %7, %10 : vector<32x256xf32>
    %c0_10 = arith.constant 0 : index
    %c0_11 = arith.constant 0 : index
    %c0_12 = arith.constant 0 : index
    %12 = vector.load %arg6[%c0_10, %c0_11, %c0_12] : memref<1x32x256xf32, #tpu.memory_space<vmem>>, vector<1x32x256xf32>
    %13 = vector.shape_cast %12 : vector<1x32x256xf32> to vector<32x256xf32>
    %14 = vector.shape_cast %11 : vector<32x256xf32> to vector<1x32x256xf32>
    tpu.vector_store %arg6[%c0_10, %c0_11, %c0_12], %14 {strides = array<i32>} : memref<1x32x256xf32, #tpu.memory_space<vmem>>, vector<1x32x256xf32>,
    return
  }
  func.func @transform_0(%arg0: i32, %arg1: i32) -> (i32, i32, i32) {
    %c0_i32 = arith.constant 0 : i32
    %c0_i32_0 = arith.constant 0 : i32
    return %arg0, %c0_i32, %arg1 : i32, i32, i32
  }
  func.func @transform_1(%arg0: i32, %arg1: i32) -> (i32, i32) {
    %c0_i32 = arith.constant 0 : i32
    %c0_i32_0 = arith.constant 0 : i32
    %c0_i32_1 = arith.constant 0 : i32
    return %c0_i32, %c0_i32_0 : i32, i32
  }
  func.func @transform_2(%arg0: i32, %arg1: i32) -> (i32, i32, i32) {
    %c0_i32 = arith.constant 0 : i32
    %c0_i32_0 = arith.constant 0 : i32
    %c0_i32_1 = arith.constant 0 : i32
    return %arg0, %c0_i32, %c0_i32_0 : i32, i32, i32
  }
  func.func @transform_3(%arg0: i32, %arg1: i32) -> (i32, i32, i32) {
    %c0_i32 = arith.constant 0 : i32
    %c0_i32_0 = arith.constant 0 : i32
    %c0_i32_1 = arith.constant 0 : i32
    return %arg0, %c0_i32, %c0_i32_0 : i32, i32, i32
  }
  func.func @transform_4(%arg0: i32, %arg1: i32) -> (i32, i32, i32) {
    %c0_i32 = arith.constant 0 : i32
    %c0_i32_0 = arith.constant 0 : i32
    return %arg0, %c0_i32, %arg1 : i32, i32, i32
  }
}

</mosaic_0001>

<llo_original>
// kernel: se_like_forward.1
$region0: #{se_like_forward.1}
  #allocation0 [shape = 'u32[]', space=smem, size = 0x4, offset = 0x4, fixed_abs, tag = 'smem constant byte address 0x4 - core index']
  #allocation1 [shape = 'u32[144,128]{1,0:T(1,128)}', space=vmem, size = 0x12000, scoped, tag = 'internal scratch']
  %s0 = inlined_call_operand.vmem [shape: f32[2,64,256], index: 0, kind: input, shape index: {}]
  %s1 = inlined_call_operand.vmem [shape: f32[32,64], index: 1, kind: input, shape index: {}]
  %s2 = inlined_call_operand.vmem [shape: f32[2,32,1], index: 2, kind: input, shape index: {}]
  %s3 = inlined_call_operand.vmem [shape: f32[2,32,1], index: 3, kind: input, shape index: {}]
  %s4 = inlined_call_operand.vmem [shape: f32[2,32,256], index: 4, kind: output, shape index: {}]
  %s5 = sld [smem:[#allocation0]]
  $region49: #{se_like_forward.1} parent=0
    _
  %s7 = ssub.s32 1, %s5
  %s8 = scalar_select 0, %s7, %s5
  loop: start=0, step=1, limit=4
  $region2: #{se_like_forward.1} parent=0 // loop_pre_header
    _
  $region3: #{se_like_forward.1} parent=0 // loop_header
    %s10 = sphi 0, %s14
    %p11 = scmp.ge.s32.totalorder %s10, 4
    %s17 = sphi 0, %s29
    %s18 = sphi 0, %s25
    %s19 = sphi 0, %s17
    %s20 = sphi 0, %s18
    %s21 = sphi 0, %s19
    %s22 = sphi 0, %s20
    %s34 = sphi 0, %s36
    %s37 = sphi 0, %s34
    %s38 = sphi 0, %s37
    %s54 = sphi 0, %s38
    %s58 = sphi 0, %s58
    %s60 = sphi 0, %s58
    %s61 = sphi 0, %s60
    %s75 = sphi 0, %s61
    %s81 = sphi 0, %s83
    %s84 = sphi 0, %s81
    %s85 = sphi 0, %s84
    %s101 = sphi 0, %s85
    %s107 = sphi 0, %s109
    %s110 = sphi 0, %s107
    %s111 = sphi 0, %s110
    %s127 = sphi 0, %s111
    %s135 = sphi 0, %s137
    %s138 = sphi 0, %s135
    %s139 = sphi 0, %s138
    %s155 = sphi 0, %s139
  $region4: #{se_like_forward.1} parent=0 // loop_header_branch
    %13 = sbr.rel (%p11) target = $region8
  $region5: #{se_like_forward.1} parent=0 // loop_body
    %s15 = ssub.s32 %s10, 1
    %s16 = ssub.s32 %s10, 2
    %s23 = sadd.s32 1, %s18
    %p24 = scmp.ge.s32.totalorder %s23, 1
    %s25 = scalar_select %p24, 0, %s23
    %s26 = sadd.s32 1, %s17
    %s27 = scalar_select %p24, %s26, %s17
    %p28 = scmp.ge.s32.totalorder %s27, 2
    %s29 = scalar_select %p28, 0, %s27
    %s30 = ssub.s32 %s17, %s29
    %s31 = ssub.s32 %s18, %s25
    %s32 = sor.u32 %s30, %s31
    %p33 = scmp.eq.s32.totalorder %s32, 0
    %s35 = sadd.s32 %s34, 1
    %s36 = scalar_select %p33, %s34, %s35
    %p39 = pneg %p33
    %p40 = scmp.eq.s32.totalorder %s10, 1
    %p41 = por %p39, %p40
    %p42 = scmp.ne.s32.totalorder %s34, %s37
    %p43 = scmp.eq.s32.totalorder %s10, 0
    %p44 = por %p42, %p43
    %p45 = scmp.ne.s32.totalorder %s34, %s37
    %p46 = scmp.eq.s32.totalorder %s15, 1
    %p47 = por %p45, %p46
    %p48 = scmp.ne.s32.totalorder %s37, %s38
    %p49 = scmp.eq.s32.totalorder %s15, 0
    %p50 = por %p48, %p49
    %p51 = scmp.ne.s32.totalorder %s37, %s38
    %p52 = scmp.eq.s32.totalorder %s16, 1
    %p53 = por %p51, %p52
    %p55 = scmp.ne.s32.totalorder %s38, %s54
    %p56 = scmp.eq.s32.totalorder %s16, 0
    %p57 = por %p55, %p56
    %s59 = sadd.s32 %s58, 1
    %p62 = scmp.eq.s32.totalorder %s10, 1
    %p63 = scmp.ne.s32.totalorder %s58, %s60
    %p64 = scmp.eq.s32.totalorder %s10, 0
    %p65 = por %p63, %p64
    %p66 = scmp.ne.s32.totalorder %s58, %s60
    %p67 = scmp.eq.s32.totalorder %s15, 1
    %p68 = por %p66, %p67
    %p69 = scmp.ne.s32.totalorder %s60, %s61
    %p70 = scmp.eq.s32.totalorder %s15, 0
    %p71 = por %p69, %p70
    %p72 = scmp.ne.s32.totalorder %s60, %s61
    %p73 = scmp.eq.s32.totalorder %s16, 1
    %p74 = por %p72, %p73
    %p76 = scmp.ne.s32.totalorder %s61, %s75
    %p77 = scmp.eq.s32.totalorder %s16, 0
    %p78 = por %p76, %p77
    %s79 = ssub.s32 %s17, %s29
    %p80 = scmp.eq.s32.totalorder %s79, 0
    %s82 = sadd.s32 %s81, 1
    %s83 = scalar_select %p80, %s81, %s82
    %p86 = pneg %p80
    %p87 = scmp.eq.s32.totalorder %s10, 1
    %p88 = por %p86, %p87
    %p89 = scmp.ne.s32.totalorder %s81, %s84
    %p90 = scmp.eq.s32.totalorder %s10, 0
    %p91 = por %p89, %p90
    %p92 = scmp.ne.s32.totalorder %s81, %s84
    %p93 = scmp.eq.s32.totalorder %s15, 1
    %p94 = por %p92, %p93
    %p95 = scmp.ne.s32.totalorder %s84, %s85
    %p96 = scmp.eq.s32.totalorder %s15, 0
    %p97 = por %p95, %p96
    %p98 = scmp.ne.s32.totalorder %s84, %s85
    %p99 = scmp.eq.s32.totalorder %s16, 1
    %p100 = por %p98, %p99
    %p102 = scmp.ne.s32.totalorder %s85, %s101
    %p103 = scmp.eq.s32.totalorder %s16, 0
    %p104 = por %p102, %p103
    %s105 = ssub.s32 %s17, %s29
    %p106 = scmp.eq.s32.totalorder %s105, 0
    %s108 = sadd.s32 %s107, 1
    %s109 = scalar_select %p106, %s107, %s108
    %p112 = pneg %p106
    %p113 = scmp.eq.s32.totalorder %s10, 1
    %p114 = por %p112, %p113
    %p115 = scmp.ne.s32.totalorder %s107, %s110
    %p116 = scmp.eq.s32.totalorder %s10, 0
    %p117 = por %p115, %p116
    %p118 = scmp.ne.s32.totalorder %s107, %s110
    %p119 = scmp.eq.s32.totalorder %s15, 1
    %p120 = por %p118, %p119
    %p121 = scmp.ne.s32.totalorder %s110, %s111
    %p122 = scmp.eq.s32.totalorder %s15, 0
    %p123 = por %p121, %p122
    %p124 = scmp.ne.s32.totalorder %s110, %s111
    %p125 = scmp.eq.s32.totalorder %s16, 1
    %p126 = por %p124, %p125
    %p128 = scmp.ne.s32.totalorder %s111, %s127
    %p129 = scmp.eq.s32.totalorder %s16, 0
    %p130 = por %p128, %p129
    %s131 = ssub.s32 %s17, %s29
    %s132 = ssub.s32 %s18, %s25
    %s133 = sor.u32 %s131, %s132
    %p134 = scmp.eq.s32.totalorder %s133, 0
    %s136 = sadd.s32 %s135, 1
    %s137 = scalar_select %p134, %s135, %s136
    %p140 = pneg %p134
    %p141 = scmp.eq.s32.totalorder %s10, 1
    %p142 = por %p140, %p141
    %p143 = scmp.ne.s32.totalorder %s135, %s138
    %p144 = scmp.eq.s32.totalorder %s10, 0
    %p145 = por %p143, %p144
    %p146 = scmp.ne.s32.totalorder %s135, %s138
    %p147 = scmp.eq.s32.totalorder %s15, 1
    %p148 = por %p146, %p147
    %p149 = scmp.ne.s32.totalorder %s138, %s139
    %p150 = scmp.eq.s32.totalorder %s15, 0
    %p151 = por %p149, %p150
    %p152 = scmp.ne.s32.totalorder %s138, %s139
    %p153 = scmp.eq.s32.totalorder %s16, 1
    %p154 = por %p152, %p153
    %p156 = scmp.ne.s32.totalorder %s139, %s155
    %p157 = scmp.eq.s32.totalorder %s16, 0
    %p158 = por %p156, %p157
    %p159 = scmp.le.s32.totalorder 1, %s10
    %p160 = scmp.lt.s32.totalorder %s10, 3
    %p161 = pnand %p159, %p160
    %p162 = pneg %p161
    // Predicated region
    $region9: #{se_like_forward.1} parent=5 // pred_check
      _
    $region10: #{se_like_forward.1} parent=5 // pred_check_branch
      %164 = sbr.rel (%p161) target = $region12
    $region11: #{se_like_forward.1} parent=5 // pred_region
      %s165 = ssub.s32 %s10, 1
      // Predicated region
      $region13: #{se_like_forward.1} parent=11 // pred_check
        %p166 = pneg %p71
      $region14: #{se_like_forward.1} parent=11 // pred_check_branch
        %168 = sbr.rel (%p166) target = $region16
      $region15: #{se_like_forward.1} parent=11 // pred_region
        _
      $region16: #{se_like_forward.1} parent=11 // pred_fallthru
        _
    $region12: #{se_like_forward.1} parent=5 // pred_fallthru
      _
    %p169 = scmp.lt.s32.totalorder %s10, 2
    // Predicated region
    $region17: #{se_like_forward.1} parent=5 // pred_check
      %p170 = pneg %p169
    $region18: #{se_like_forward.1} parent=5 // pred_check_branch
      %172 = sbr.rel (%p170) target = $region20
    $region19: #{se_like_forward.1} parent=5 // pred_region
      // Predicated region
      $region21: #{se_like_forward.1} parent=19 // pred_check
        %p173 = pneg %p44
      $region22: #{se_like_forward.1} parent=19 // pred_check_branch
        %175 = sbr.rel (%p173) target = $region24
      $region23: #{se_like_forward.1} parent=19 // pred_region
        %s176 = smul.u32 2, %s18
        %p177 = scmp.lt.s32.totalorder %s17, 1
        %s178 = scalar_select %p177, %s17, 1
        %p179 = scmp.lt.s32.totalorder %s176, 1
        %s180 = scalar_select %p179, %s176, 1
        %s181 = smul.addr %s178, 16
        %s182 = sadd.s32 %s180, %s181
        %s183 = smul.addr %s182, 8
        %s184 = scalar_lea.vmem %s0, %s183
        %s185 = smul.u32 2, %s18
      $region24: #{se_like_forward.1} parent=19 // pred_fallthru
        _
      // Predicated region
      $region25: #{se_like_forward.1} parent=19 // pred_check
        %p186 = pneg %p91
      $region26: #{se_like_forward.1} parent=19 // pred_check_branch
        %188 = sbr.rel (%p186) target = $region28
      $region27: #{se_like_forward.1} parent=19 // pred_region
        %p189 = scmp.lt.s32.totalorder %s17, 1
        %s190 = scalar_select %p189, %s17, 1
        %s191 = smul.addr %s190, 4
        %s192 = smul.addr %s191, 8
        %s193 = scalar_lea.vmem %s2, %s192
      $region28: #{se_like_forward.1} parent=19 // pred_fallthru
        _
      // Predicated region
      $region29: #{se_like_forward.1} parent=19 // pred_check
        %p194 = pneg %p117
      $region30: #{se_like_forward.1} parent=19 // pred_check_branch
        %196 = sbr.rel (%p194) target = $region32
      $region31: #{se_like_forward.1} parent=19 // pred_region
        %p197 = scmp.lt.s32.totalorder %s17, 1
        %s198 = scalar_select %p197, %s17, 1
        %s199 = smul.addr %s198, 4
        %s200 = smul.addr %s199, 8
        %s201 = scalar_lea.vmem %s3, %s200
      $region32: #{se_like_forward.1} parent=19 // pred_fallthru
        _
    $region20: #{se_like_forward.1} parent=5 // pred_fallthru
      _
    %p202 = scmp.le.s32.totalorder 1, %s10
    %p203 = scmp.lt.s32.totalorder %s10, 3
    %p204 = pnand %p202, %p203
    %p205 = pneg %p204
    // Predicated region
    $region33: #{se_like_forward.1} parent=5 // pred_check
      _
    $region34: #{se_like_forward.1} parent=5 // pred_check_branch
      %207 = sbr.rel (%p204) target = $region36
    $region35: #{se_like_forward.1} parent=5 // pred_region
      %s208 = ssub.s32 %s10, 1
      %s209 = smul.u32 2, %s20
      %p210 = scmp.lt.s32.totalorder %s19, 1
      %s211 = scalar_select %p210, %s19, 1
      %p212 = scmp.lt.s32.totalorder %s209, 1
      %s213 = scalar_select %p212, %s209, 1
      %s214 = smul.addr %s211, 16
      %s215 = sadd.s32 %s213, %s214
      %s216 = smul.addr %s215, 8
      %s217 = scalar_lea.vmem %s0, %s216
      %p218 = pneg %p50
      %p219 = pneg %p47
      %p220 = pneg %p71
      %p221 = pneg %p68
      %p222 = scmp.lt.s32.totalorder %s19, 1
      %s223 = scalar_select %p222, %s19, 1
      %s224 = smul.addr %s223, 4
      %s225 = smul.addr %s224, 8
      %s226 = scalar_lea.vmem %s2, %s225
      %p227 = pneg %p97
      %p228 = pneg %p94
      %p229 = scmp.lt.s32.totalorder %s19, 1
      %s230 = scalar_select %p229, %s19, 1
      %s231 = smul.addr %s230, 4
      %s232 = smul.addr %s231, 8
      %s233 = scalar_lea.vmem %s3, %s232
      %p234 = pneg %p123
      %p235 = pneg %p120
      %p236 = pneg %p151
      %p237 = pneg %p148
      %s238 = smul.u32 2, %s20
      %p239 = scmp.lt.s32.totalorder %s19, 1
      %s240 = scalar_select %p239, %s19, 1
      %p241 = scmp.lt.s32.totalorder %s238, 1
      %s242 = scalar_select %p241, %s238, 1
      %s243 = smul.addr %s240, 8
      %s244 = sadd.s32 %s242, %s243
      %s245 = smul.addr %s244, 8
      %s246 = scalar_lea.vmem %s4, %s245
      %s247 = smul.u32 2, %s20
      %p248 = scmp.lt.s32.totalorder %s19, 1
      %s249 = scalar_select %p248, %s19, 1
      %p250 = scmp.lt.s32.totalorder %s247, 1
      %s251 = scalar_select %p250, %s247, 1
      %s252 = smul.addr %s249, 16
      %s253 = sadd.s32 %s251, %s252
      %s254 = smul.addr %s253, 8
      %s255 = scalar_lea.vmem %s0, %s254
      %s256 = smul.u32 2, %s20
      %p257 = scmp.lt.s32.totalorder %s19, 1
      %s258 = scalar_select %p257, %s19, 1
      %s259 = smul.addr %s258, 4
      %s260 = smul.addr %s259, 8
      %s261 = scalar_lea.vmem %s2, %s260
      %p262 = scmp.lt.s32.totalorder %s19, 1
      %s263 = scalar_select %p262, %s19, 1
      %s264 = smul.addr %s263, 4
      %s265 = smul.addr %s264, 8
      %s266 = scalar_lea.vmem %s3, %s265
      %s267 = smul.u32 2, %s20
      %p268 = scmp.lt.s32.totalorder %s19, 1
      %s269 = scalar_select %p268, %s19, 1
      %p270 = scmp.lt.s32.totalorder %s267, 1
      %s271 = scalar_select %p270, %s267, 1
      %s272 = smul.addr %s269, 8
      %s273 = sadd.s32 %s271, %s272
      %s274 = smul.addr %s273, 8
      %s275 = scalar_lea.vmem %s4, %s274
      %s276 = smul.u32 2, %s20
      %v277 = vld [vmem:[%s1] sm:$0xff]
      %v278 = vld [vmem:[%s1 + $0x8] sm:$0xff]
      %v279 = vld [vmem:[%s1 + $0x10] sm:$0xff]
      %v280 = vld [vmem:[%s1 + $0x18] sm:$0xff]
      %v281 = vld [vmem:[%s255] sm:$0xff]
      %v282 = vld [vmem:[%s255 + $0x8] sm:$0xff]
      %v283 = vld [vmem:[%s255 + $0x10] sm:$0xff]
      %v284 = vld [vmem:[%s255 + $0x18] sm:$0xff]
      %v285 = vld [vmem:[%s255 + $0x20] sm:$0xff]
      %v286 = vld [vmem:[%s255 + $0x28] sm:$0xff]
      %v287 = vld [vmem:[%s255 + $0x30] sm:$0xff]
      %v288 = vld [vmem:[%s255 + $0x38] sm:$0xff]
      %v289 = vld [vmem:[%s255 + $0x40] sm:$0xff]
      %v290 = vld [vmem:[%s255 + $0x48] sm:$0xff]
      %v291 = vld [vmem:[%s255 + $0x50] sm:$0xff]
      %v292 = vld [vmem:[%s255 + $0x58] sm:$0xff]
      %v293 = vld [vmem:[%s255 + $0x60] sm:$0xff]
      %v294 = vld [vmem:[%s255 + $0x68] sm:$0xff]
      %v295 = vld [vmem:[%s255 + $0x70] sm:$0xff]
      %v296 = vld [vmem:[%s255 + $0x78] sm:$0xff]
      %vm297 = vcmask 523264
      %v299 = vsel %vm297, %v277, 0
      %v302 = vsel %vm297, %v278, 0
      %v305 = vsel %vm297, %v279, 0
      %v308 = vsel %vm297, %v280, 0
      %310 = vmatprep.subr.mxu0 %v282
      %311 = vmatpush1.msra.mxu0 %v281
      %312 = vmatprep.subr.mxu0 %v284
      %313 = vmatpush1.msra.mxu0 %v283
      %314 = vmatprep.subr.mxu0 %v286
      %315 = vmatpush1.msra.mxu0 %v285
      %316 = vmatprep.subr.mxu0 %v288
      %317 = vmatpush1.msra.mxu0 %v287
      %318 = vmatprep.subr.mxu0 %v290
      %319 = vmatpush1.msra.mxu0 %v289
      %320 = vmatprep.subr.mxu0 %v292
      %321 = vmatpush1.msra.mxu0 %v291
      %322 = vmatprep.subr.mxu0 %v294
      %323 = vmatpush1.msra.mxu0 %v293
      %324 = vmatprep.subr.mxu0 %v296
      %325 = vmatpush1.msra.mxu0 %v295
      %326 = vmatprep.subr.mxu0 0.0
      %327 = vmatpush1.msra.mxu0 0.0
      %328 = vmatprep.subr.mxu0 0.0
      %329 = vmatpush1.msra.mxu0 0.0
      %330 = vmatprep.subr.mxu0 0.0
      %331 = vmatpush1.msra.mxu0 0.0
      %332 = vmatprep.subr.mxu0 0.0
      %333 = vmatpush1.msra.mxu0 0.0
      %334 = vmatprep.subr.mxu0 0.0
      %335 = vmatpush1.msra.mxu0 0.0
      %336 = vmatprep.subr.mxu0 0.0
      %337 = vmatpush1.msra.mxu0 0.0
      %338 = vmatprep.subr.mxu0 0.0
      %339 = vmatpush1.msra.mxu0 0.0
      %340 = vmatprep.subr.mxu0 0.0
      %341 = vmatpush1.msra.mxu0 0.0
      %342 = vmatprep.subr.mxu0 0.0
      %343 = vmatpush1.msra.mxu0 0.0
      %344 = vmatprep.subr.mxu0 0.0
      %345 = vmatpush1.msra.mxu0 0.0
      %346 = vmatprep.subr.mxu0 0.0
      %347 = vmatpush1.msra.mxu0 0.0
      %348 = vmatprep.subr.mxu0 0.0
      %349 = vmatpush1.msra.mxu0 0.0
      %350 = vmatprep.subr.mxu0 0.0
      %351 = vmatpush1.msra.mxu0 0.0
      %352 = vmatprep.subr.mxu0 0.0
      %353 = vmatpush1.msra.mxu0 0.0
      %354 = vmatprep.subr.mxu0 0.0
      %355 = vmatpush1.msra.mxu0 0.0
      %356 = vmatprep.subr.mxu0 0.0
      %357 = vmatpush1.msra.mxu0 0.0
      %358 = vmatprep.subr.mxu0 0.0
      %359 = vmatpush1.msra.mxu0 0.0
      %360 = vmatprep.subr.mxu0 0.0
      %361 = vmatpush1.msra.mxu0 0.0
      %362 = vmatprep.subr.mxu0 0.0
      %363 = vmatpush1.msra.mxu0 0.0
      %364 = vmatprep.subr.mxu0 0.0
      %365 = vmatpush1.msra.mxu0 0.0
      %366 = vmatprep.subr.mxu0 0.0
      %367 = vmatpush1.msra.mxu0 0.0
      %368 = vmatprep.subr.mxu0 0.0
      %369 = vmatpush1.msra.mxu0 0.0
      %370 = vmatprep.subr.mxu0 0.0
      %371 = vmatpush1.msra.mxu0 0.0
      %372 = vmatprep.subr.mxu0 0.0
      %373 = vmatpush1.msra.mxu0 0.0
      %374 = vmatprep.mubr.f32.mxu0 0.0
      %375 = vmatmul.mubr.f32.gmra.mrb[0].mxu0 %v299
      %v376 = vpop.f32.mrb[0].mxu0
      %v377 = vadd.f32 0.0, %v376
      %v378 = vpop.f32.mrb[0].mxu0
      %v379 = vadd.f32 0.0, %v378
      %380 = vmatprep.mubr.f32.mxu0 0.0
      %381 = vmatmul.mubr.f32.gmra.mrb[0].mxu0 %v302
      %v382 = vpop.f32.mrb[0].mxu0
      %v383 = vadd.f32 0.0, %v382
      %v384 = vpop.f32.mrb[0].mxu0
      %v385 = vadd.f32 0.0, %v384
      %386 = vmatprep.mubr.f32.mxu0 0.0
      %387 = vmatmul.mubr.f32.gmra.mrb[0].mxu0 %v305
      %v388 = vpop.f32.mrb[0].mxu0
      %v389 = vadd.f32 0.0, %v388
      %v390 = vpop.f32.mrb[0].mxu0
      %v391 = vadd.f32 0.0, %v390
      %392 = vmatprep.mubr.f32.mxu0 0.0
      %393 = vmatmul.mubr.f32.gmra.mrb[0].mxu0 %v308
      %v394 = vpop.f32.mrb[0].mxu0
      %v395 = vadd.f32 0.0, %v394
      %v396 = vpop.f32.mrb[0].mxu0
      %v397 = vadd.f32 0.0, %v396
      %398 = vdwg.mxu0
      %v399 = vld [vmem:[%s261] sm:$0xff]
      %v400 = vld [vmem:[%s261 + $0x8] sm:$0xff]
      %v401 = vld [vmem:[%s261 + $0x10] sm:$0xff]
      %v402 = vld [vmem:[%s261 + $0x18] sm:$0xff]
      %404 = vset.pattern.permute.xlu0 0
      %405 = vperm.xlu0 %404, %v399
      %v406 = vpop.permute.xlu0 %405
      %409 = vset.pattern.permute.xlu0 0
      %410 = vperm.xlu0 %409, %v400
      %v411 = vpop.permute.xlu0 %410
      %414 = vset.pattern.permute.xlu0 0
      %415 = vperm.xlu0 %414, %v401
      %v416 = vpop.permute.xlu0 %415
      %419 = vset.pattern.permute.xlu0 0
      %420 = vperm.xlu0 %419, %v402
      %v421 = vpop.permute.xlu0 %420
      %v423 = vmul.f32 %v377, %v406
      %v424 = vmul.f32 %v379, %v406
      %v425 = vmul.f32 %v383, %v411
      %v426 = vmul.f32 %v385, %v411
      %v427 = vmul.f32 %v389, %v416
      %v428 = vmul.f32 %v391, %v416
      %v429 = vmul.f32 %v395, %v421
      %v430 = vmul.f32 %v397, %v421
      %v431 = vld [vmem:[%s266] sm:$0xff]
      %v432 = vld [vmem:[%s266 + $0x8] sm:$0xff]
      %v433 = vld [vmem:[%s266 + $0x10] sm:$0xff]
      %v434 = vld [vmem:[%s266 + $0x18] sm:$0xff]
      %436 = vset.pattern.permute.xlu0 0
      %437 = vperm.xlu0 %436, %v431
      %v438 = vpop.permute.xlu0 %437
      %441 = vset.pattern.permute.xlu0 0
      %442 = vperm.xlu0 %441, %v432
      %v443 = vpop.permute.xlu0 %442
      %446 = vset.pattern.permute.xlu0 0
      %447 = vperm.xlu0 %446, %v433
      %v448 = vpop.permute.xlu0 %447
      %451 = vset.pattern.permute.xlu0 0
      %452 = vperm.xlu0 %451, %v434
      %v453 = vpop.permute.xlu0 %452
      %v455 = vadd.f32 %v423, %v438
      %v456 = vadd.f32 %v424, %v438
      %v457 = vadd.f32 %v425, %v443
      %v458 = vadd.f32 %v426, %v443
      %v459 = vadd.f32 %v427, %v448
      %v460 = vadd.f32 %v428, %v448
      %v461 = vadd.f32 %v429, %v453
      %v462 = vadd.f32 %v430, %v453
      %463 = vst [vmem:[%s275] sm:$0xff] %v455
      %464 = vst [vmem:[%s275 + $0x8] sm:$0xff] %v456
      %465 = vst [vmem:[%s275 + $0x10] sm:$0xff] %v457
      %466 = vst [vmem:[%s275 + $0x18] sm:$0xff] %v458
      %467 = vst [vmem:[%s275 + $0x20] sm:$0xff] %v459
      %468 = vst [vmem:[%s275 + $0x28] sm:$0xff] %v460
      %469 = vst [vmem:[%s275 + $0x30] sm:$0xff] %v461
      %470 = vst [vmem:[%s275 + $0x38] sm:$0xff] %v462
      %s471 = smul.u32 2, %s20
      %p472 = scmp.lt.s32.totalorder %s19, 1
      %s473 = scalar_select %p472, %s19, 1
      %p474 = scmp.lt.s32.totalorder %s471, 1
      %s475 = scalar_select %p474, %s471, 1
      %s476 = smul.addr %s473, 8
      %s477 = sadd.s32 %s475, %s476
      %s478 = smul.addr %s477, 8
      %s479 = scalar_lea.vmem %s4, %s478
      // Predicated region
      $region37: #{se_like_forward.1} parent=35 // pred_check
        %p480 = pneg %p148
      $region38: #{se_like_forward.1} parent=35 // pred_check_branch
        %482 = sbr.rel (%p480) target = $region40
      $region39: #{se_like_forward.1} parent=35 // pred_region
        %s483 = smul.u32 2, %s20
      $region40: #{se_like_forward.1} parent=35 // pred_fallthru
        _
    $region36: #{se_like_forward.1} parent=5 // pred_fallthru
      _
    %p484 = scmp.le.s32.totalorder 2, %s10
    // Predicated region
    $region41: #{se_like_forward.1} parent=5 // pred_check
      %p485 = pneg %p484
    $region42: #{se_like_forward.1} parent=5 // pred_check_branch
      %487 = sbr.rel (%p485) target = $region44
    $region43: #{se_like_forward.1} parent=5 // pred_region
      %s488 = ssub.s32 %s10, 2
      // Predicated region
      $region45: #{se_like_forward.1} parent=43 // pred_check
        %p489 = pneg %p154
      $region46: #{se_like_forward.1} parent=43 // pred_check_branch
        %491 = sbr.rel (%p489) target = $region48
      $region47: #{se_like_forward.1} parent=43 // pred_region
        %s492 = smul.u32 2, %s22
        %p493 = scmp.lt.s32.totalorder %s21, 1
        %s494 = scalar_select %p493, %s21, 1
        %p495 = scmp.lt.s32.totalorder %s492, 1
        %s496 = scalar_select %p495, %s492, 1
        %s497 = smul.addr %s494, 8
        %s498 = sadd.s32 %s496, %s497
        %s499 = smul.addr %s498, 8
        %s500 = scalar_lea.vmem %s4, %s499
      $region48: #{se_like_forward.1} parent=43 // pred_fallthru
        _
    $region44: #{se_like_forward.1} parent=5 // pred_fallthru
      _
  $region6: #{se_like_forward.1} parent=0 // loop_footer
    %s14 = sadd.s32 1, %s10
  $region7: #{se_like_forward.1} parent=0 // loop_footer_branch
    %9 = sbr.rel target = $region3
  $region8: #{se_like_forward.1} parent=0 // loop_exit
    _

</llo_original>
